<compile_context>
chip_gen: v5e
topology: v5e:2x2
jax: 0.10.0
libtpu: 0.0.40
codegen_flags: <defaults>
</compile_context>

<pallas_src>
import jax
import jax.numpy as jnp
from jax.experimental import pallas as pl
from jax.experimental.pallas import tpu as pltpu


def _shift_lanes(a, s, n):
    """result[:, p] = a[:, (p + s) mod n] — lane rotation spelled as two static slices.

    Equivalent to an XLU lane rotate (pltpu.roll); written explicitly so the shift
    direction is unambiguous.  `s` is a small static int (|s| <= W + 1).
    """
    k = (-s) % n
    if k == 0:
        return a
    return jnp.concatenate([a[:, n - k:], a[:, :n - k]], axis=1)


def _make_kernel(H, W, Cin, Cout, K_pad, nb):
    HW = H * W
    K = 9 * Cin
    # Tap order (dy, dx) row-major matches the wrapper's weight repack (ky, kx, ci).
    tap_offsets = [(dy, dx) for dy in (-1, 0, 1) for dx in (-1, 0, 1)]

    def kernel(x_ref, w_ref, m_ref, o_ref, patches_ref):
        # x_ref:       (nb, Cin, H*W)  input batch-group, spatial dims flattened (lane-dense)
        # w_ref:       (Cout, K_pad)   conv taps, cols (ky, kx, ci) + zero pad to K_pad
        # m_ref:       (9, H*W)        {0,1} boundary masks ('same' zero padding), one per tap
        # o_ref:       (nb, Cout, H*W) output: exactly Cout channels, lane-dense H*W
        # patches_ref: (K_pad, H*W)    VMEM scratch: im2col patch matrix of one image

        # Zero the K-padding rows once per grid step (scratch VMEM may hold stale data from a
        # previous kernel; zero weight columns alone would not protect against inf/nan).
        if K_pad > K:
            patches_ref[pl.ds(K, K_pad - K), :] = jnp.zeros(
                (K_pad - K, HW), patches_ref.dtype)

        inv_hw = 1.0 / HW

        def one_image(i, carry):
            x_img = x_ref[i]                                   # (Cin, H*W), native dtype
            # Build the patch matrix with lane shifts + boundary masks (no tile-crossing
            # im2col copies, no pre-padded input).
            for t, (dy, dx) in enumerate(tap_offsets):
                tap = _shift_lanes(x_img, dy * W + dx, HW)
                if (dy, dx) != (0, 0):                         # center tap needs no mask
                    tap = tap * m_ref[pl.ds(t, 1), :]
                patches_ref[pl.ds(t * Cin, Cin), :] = tap
            # One MXU matmul per image: (Cout, K_pad) @ (K_pad, H*W), f32 accumulation.
            acc = jnp.dot(w_ref[...], patches_ref[...],
                          preferred_element_type=jnp.float32)
            # Conv bias intentionally omitted: InstanceNorm's mean subtraction cancels it.
            # InstanceNorm2d (affine=False, eps=1e-5): two-pass stats over H*W (lane reduce).
            mean = jnp.sum(acc, axis=1, keepdims=True) * inv_hw
            cen = acc - mean
            var = jnp.sum(cen * cen, axis=1, keepdims=True) * inv_hw
            y = cen * jax.lax.rsqrt(var + 1e-5)
            # ELU(alpha=1): x if x > 0 else exp(x) - 1.
            y = jnp.where(y > 0, y, jnp.exp(jnp.minimum(y, 0.0)) - 1.0)
            o_ref[i] = y.astype(o_ref.dtype)
            return carry

        # fori_loop (not a Python loop) so per-image temporaries have bounded live ranges.
        jax.lax.fori_loop(0, nb, one_image, 0)

    return kernel


def conv_in_elu(x_nchw, w_oihw, bias=None, *, batch_block=None):
    """Conv2d(3x3, pad=1) -> InstanceNorm2d(affine=False) -> ELU.  NCHW in, NCHW out.

    `bias` is accepted for API parity with nn.Conv2d(bias=True) but is NOT applied:
    InstanceNorm2d(affine=False) subtracts the per-(n, c) mean immediately after the conv,
    so a per-channel bias cancels exactly.  (Only valid for this exact module: a norm with
    no affine params directly following the conv.)
    """
    del bias  # mathematically cancelled by InstanceNorm(affine=False)
    N, Cin, H, W = x_nchw.shape
    Cout = w_oihw.shape[0]
    assert w_oihw.shape == (Cout, Cin, 3, 3), w_oihw.shape
    HW = H * W
    K = 9 * Cin
    K_pad = max(128, ((K + 127) // 128) * 128)   # dense MXU contraction depth
    dtype = x_nchw.dtype
    esz = dtype.itemsize

    # Metadata-only reshape (no transpose / pad / HBM round trip): NCHW -> (N, Cin, H*W).
    x_r = x_nchw.reshape(N, Cin, HW)

    # Static weight repack: OIHW -> (Cout, (ky, kx, ci)), contraction dim zero-padded to
    # K_pad so the MXU LHS feed is lane-dense and unmasked.
    w_r = jnp.transpose(w_oihw, (0, 2, 3, 1)).reshape(Cout, K).astype(dtype)
    w_r = jnp.pad(w_r, ((0, 0), (0, K_pad - K)))

    # Tiny (9, H*W) {0,1} boundary-mask table for the 'same' zero padding (built once, a few
    # KiB; avoids integer div/mod on the vector path in-kernel).
    pos = jnp.arange(HW)
    yy = (pos // W).reshape(1, HW)
    xx = (pos % W).reshape(1, HW)
    mask_rows = []
    for dy in (-1, 0, 1):
        for dx in (-1, 0, 1):
            ok = ((yy + dy >= 0) & (yy + dy < H) & (xx + dx >= 0) & (xx + dx < W))
            mask_rows.append(ok)
    tap_masks = jnp.concatenate(mask_rows, axis=0).astype(dtype)          # (9, H*W)

    # ---- VMEM accounting (per actual buffer) and batch-group size --------------------
    bytes_x_img = Cin * HW * esz                 # input block, per image
    bytes_o_img = Cout * HW * esz                # output block, per image
    fixed = (K_pad * HW * esz                    # patch scratch (single buffer)
             + 2 * Cout * K_pad * esz            # weight block (double-buffered, a few KiB)
             + 2 * 9 * HW * esz                  # boundary-mask block (double-buffered)
             + 3 * Cin * HW * esz                # x_img + shift/mask temporaries
             + 3 * Cout * HW * 4)                # f32 acc / centered / normalized temps

    try:
        vmem_cap = int(getattr(pltpu.get_tpu_info(), "vmem_capacity_bytes", 128 << 20))
    except Exception:
        vmem_cap = 128 << 20
    # Leave Mosaic internal-scratch headroom: ~48 MiB ceiling on 64 MiB parts (v7x),
    # ~96 MiB on 128 MiB parts (v5e / v6e).  No forced multi-step grid split.
    vmem_ceiling = min((vmem_cap * 3) // 4, 96 << 20)
    budget = (vmem_ceiling * 4) // 5

    def vmem_usage(nb):
        # I/O blocks are double-buffered by the pipeline; compute temporaries are bounded by
        # the in-kernel fori_loop (one image at a time) so they do not scale with nb.
        return nb * 2 * (bytes_x_img + bytes_o_img) + fixed

    if batch_block is not None:
        assert N % batch_block == 0, "batch_block must divide N (blocks are not masked)"
        nb = batch_block
    else:
        nb = N
        while nb > 1 and (N % nb != 0 or vmem_usage(nb) > budget):
            nb -= 1
    # TODO(synk): if vmem_usage(1) > budget (very large H*W) this needs the H-tiled
    # split-stats variant; currently we still run with nb=1 and rely on vmem_limit headroom.

    vmem_limit = int(min(max(2 * vmem_usage(nb), 32 << 20), vmem_ceiling))

    out = pl.pallas_call(
        _make_kernel(H, W, Cin, Cout, K_pad, nb),
        out_shape=jax.ShapeDtypeStruct((N, Cout, HW), dtype),
        grid_spec=pltpu.PrefetchScalarGridSpec(
            num_scalar_prefetch=0,
            grid=(N // nb,),
            in_specs=[
                pl.BlockSpec((nb, Cin, HW), lambda n: (n, 0, 0)),
                # Constant-index weight / mask tiles: a few KiB each, so the default double
                # buffering overhead is negligible (single-buffering them is a non-issue).
                pl.BlockSpec((Cout, K_pad), lambda n: (0, 0)),
                pl.BlockSpec((9, HW), lambda n: (0, 0)),
            ],
            out_specs=pl.BlockSpec((nb, Cout, HW), lambda n: (n, 0, 0)),
            scratch_shapes=[pltpu.VMEM((K_pad, HW), dtype)],
        ),
        compiler_params=pltpu.CompilerParams(
            dimension_semantics=("parallel",),
            vmem_limit_bytes=vmem_limit),
    )(x_r, w_r, tap_masks)

    # Metadata-only reshape back to NCHW (no channel slice, no transpose).
    return out.reshape(N, Cout, H, W)


def conv_in_elu_ref(x_nchw, w_oihw, bias):
    """Pure-JAX reference (conv with bias, two-pass IN stats, ELU) for validation."""
    y = jax.lax.conv_general_dilated(
        x_nchw, w_oihw, window_strides=(1, 1), padding="SAME",
        dimension_numbers=("NCHW", "OIHW", "NCHW"))
    y = y + bias[None, :, None, None]
    mean = jnp.mean(y, axis=(2, 3), keepdims=True)
    var = jnp.mean((y - mean) ** 2, axis=(2, 3), keepdims=True)
    y = (y - mean) * jax.lax.rsqrt(var + 1e-5)
    return jnp.where(y > 0, y, jnp.exp(y) - 1.0)


if __name__ == "__main__":
    N, Cin, Cout, H, W = 2, 4, 8, 16, 16
    key = jax.random.PRNGKey(0)
    kx, kw, kb = jax.random.split(key, 3)

    x = jax.random.normal(kx, (N, Cin, H, W), jnp.float32)
    # Roughly Kaiming-scaled parameters (shapes match nn.Conv2d(in_ch, out_ch, 3)).
    w = jax.random.normal(kw, (Cout, Cin, 3, 3), jnp.float32) * (1.0 / (Cin * 9) ** 0.5)
    b = jax.random.normal(kb, (Cout,), jnp.float32) * 0.1

    out = jax.block_until_ready(conv_in_elu(x, w, b))
    ref = jax.block_until_ready(conv_in_elu_ref(x, w, b))

    assert out.shape == (N, Cout, H, W), out.shape
    max_err = float(jnp.max(jnp.abs(out - ref)))
    assert jnp.allclose(out, ref, atol=1e-4, rtol=1e-4), max_err
    print("KERNEL_OK")
</pallas_src>

<mosaic_0001>
module attributes {stable_mosaic.version = 11 : i64} {
  func.func @kernel(%arg0: i32, %arg1: memref<2x4x256xf32, #tpu.memory_space<vmem>>, %arg2: memref<8x128xf32, #tpu.memory_space<vmem>>, %arg3: memref<9x256xf32, #tpu.memory_space<vmem>>, %arg4: memref<2x8x256xf32, #tpu.memory_space<vmem>>, %arg5: memref<128x256xf32, #tpu.memory_space<vmem>>) attributes {dimension_semantics = [#tpu.dimension_semantics<parallel>], iteration_bounds = array<i64: 1>, scalar_prefetch = 0 : i64, scratch_operands = 1 : i64, tpu.core_type = #tpu.core_type<tc>, window_params = [{transform_indices = @transform_0, window_bounds = array<i64: 2, 4, 256>}, {pipeline_mode = #tpu.pipeline_mode<synchronous>, transform_indices = @transform_1, window_bounds = array<i64: 8, 128>}, {pipeline_mode = #tpu.pipeline_mode<synchronous>, transform_indices = @transform_2, window_bounds = array<i64: 9, 256>}, {transform_indices = @transform_3, window_bounds = array<i64: 2, 8, 256>}]} {
    %cst = arith.constant 0.000000e+00 : f32
    %0 = vector.broadcast %cst : f32 to vector<92x256xf32>
    %c36 = arith.constant 36 : index
    %c0 = arith.constant 0 : index
    %1 = vector.load %arg5[%c36, %c0] : memref<128x256xf32, #tpu.memory_space<vmem>>, vector<92x256xf32>
    tpu.vector_store %arg5[%c36, %c0], %0 {strides = array<i32>} : memref<128x256xf32, #tpu.memory_space<vmem>>, vector<92x256xf32>,
    %c0_i32 = arith.constant 0 : i32
    %c2_i32 = arith.constant 2 : i32
    %2 = arith.addi %c0_i32, %c2_i32 : i32
    %c1_i32 = arith.constant 1 : i32
    scf.for %arg6 = %c0_i32 to %2 step %c1_i32  : i32 {
      %3 = arith.index_cast %arg6 : i32 to index
      %c0_1 = arith.constant 0 : index
      %c0_2 = arith.constant 0 : index
      %4 = vector.load %arg1[%3, %c0_1, %c0_2] : memref<2x4x256xf32, #tpu.memory_space<vmem>>, vector<1x4x256xf32>
      %5 = vector.shape_cast %4 : vector<1x4x256xf32> to vector<4x256xf32>
      %6 = vector.extract_strided_slice %5 {offsets = [0, 239], sizes = [4, 17], strides = [1, 1]} : vector<4x256xf32> to vector<4x17xf32>
      %7 = vector.extract_strided_slice %5 {offsets = [0, 0], sizes = [4, 239], strides = [1, 1]} : vector<4x256xf32> to vector<4x239xf32>
      %8 = tpu.concatenate %6, %7 in 1 : vector<4x17xf32>, vector<4x239xf32> -> vector<4x256xf32>
      %c0_3 = arith.constant 0 : index
      %c0_4 = arith.constant 0 : index
      %9 = vector.load %arg3[%c0_3, %c0_4] : memref<9x256xf32, #tpu.memory_space<vmem>>, vector<1x256xf32>
      %10 = vector.broadcast %9 : vector<1x256xf32> to vector<4x256xf32>
      %11 = arith.mulf %8, %10 : vector<4x256xf32>
      %c0_5 = arith.constant 0 : index
      %c0_6 = arith.constant 0 : index
      %12 = vector.load %arg5[%c0_5, %c0_6] : memref<128x256xf32, #tpu.memory_space<vmem>>, vector<4x256xf32>
      tpu.vector_store %arg5[%c0_5, %c0_6], %11 {strides = array<i32>} : memref<128x256xf32, #tpu.memory_space<vmem>>, vector<4x256xf32>,
      %13 = vector.extract_strided_slice %5 {offsets = [0, 240], sizes = [4, 16], strides = [1, 1]} : vector<4x256xf32> to vector<4x16xf32>
      %14 = vector.extract_strided_slice %5 {offsets = [0, 0], sizes = [4, 240], strides = [1, 1]} : vector<4x256xf32> to vector<4x240xf32>
      %15 = tpu.concatenate %13, %14 in 1 : vector<4x16xf32>, vector<4x240xf32> -> vector<4x256xf32>
      %c1 = arith.constant 1 : index
      %c0_7 = arith.constant 0 : index
      %16 = vector.load %arg3[%c1, %c0_7] : memref<9x256xf32, #tpu.memory_space<vmem>>, vector<1x256xf32>
      %17 = vector.broadcast %16 : vector<1x256xf32> to vector<4x256xf32>
      %18 = arith.mulf %15, %17 : vector<4x256xf32>
      %c4 = arith.constant 4 : index
      %c0_8 = arith.constant 0 : index
      %19 = vector.load %arg5[%c4, %c0_8] : memref<128x256xf32, #tpu.memory_space<vmem>>, vector<4x256xf32>
      tpu.vector_store %arg5[%c4, %c0_8], %18 {strides = array<i32>} : memref<128x256xf32, #tpu.memory_space<vmem>>, vector<4x256xf32>,
      %20 = vector.extract_strided_slice %5 {offsets = [0, 241], sizes = [4, 15], strides = [1, 1]} : vector<4x256xf32> to vector<4x15xf32>
      %21 = vector.extract_strided_slice %5 {offsets = [0, 0], sizes = [4, 241], strides = [1, 1]} : vector<4x256xf32> to vector<4x241xf32>
      %22 = tpu.concatenate %20, %21 in 1 : vector<4x15xf32>, vector<4x241xf32> -> vector<4x256xf32>
      %c2 = arith.constant 2 : index
      %c0_9 = arith.constant 0 : index
      %23 = vector.load %arg3[%c2, %c0_9] : memref<9x256xf32, #tpu.memory_space<vmem>>, vector<1x256xf32>
      %24 = vector.broadcast %23 : vector<1x256xf32> to vector<4x256xf32>
      %25 = arith.mulf %22, %24 : vector<4x256xf32>
      %c8 = arith.constant 8 : index
      %c0_10 = arith.constant 0 : index
      %26 = vector.load %arg5[%c8, %c0_10] : memref<128x256xf32, #tpu.memory_space<vmem>>, vector<4x256xf32>
      tpu.vector_store %arg5[%c8, %c0_10], %25 {strides = array<i32>} : memref<128x256xf32, #tpu.memory_space<vmem>>, vector<4x256xf32>,
      %27 = vector.extract_strided_slice %5 {offsets = [0, 255], sizes = [4, 1], strides = [1, 1]} : vector<4x256xf32> to vector<4x1xf32>
      %28 = vector.extract_strided_slice %5 {offsets = [0, 0], sizes = [4, 255], strides = [1, 1]} : vector<4x256xf32> to vector<4x255xf32>
      %29 = tpu.concatenate %27, %28 in 1 : vector<4x1xf32>, vector<4x255xf32> -> vector<4x256xf32>
      %c3 = arith.constant 3 : index
      %c0_11 = arith.constant 0 : index
      %30 = vector.load %arg3[%c3, %c0_11] : memref<9x256xf32, #tpu.memory_space<vmem>>, vector<1x256xf32>
      %31 = vector.broadcast %30 : vector<1x256xf32> to vector<4x256xf32>
      %32 = arith.mulf %29, %31 : vector<4x256xf32>
      %c12 = arith.constant 12 : index
      %c0_12 = arith.constant 0 : index
      %33 = vector.load %arg5[%c12, %c0_12] : memref<128x256xf32, #tpu.memory_space<vmem>>, vector<4x256xf32>
      tpu.vector_store %arg5[%c12, %c0_12], %32 {strides = array<i32>} : memref<128x256xf32, #tpu.memory_space<vmem>>, vector<4x256xf32>,
      %c16 = arith.constant 16 : index
      %c0_13 = arith.constant 0 : index
      %34 = vector.load %arg5[%c16, %c0_13] : memref<128x256xf32, #tpu.memory_space<vmem>>, vector<4x256xf32>
      tpu.vector_store %arg5[%c16, %c0_13], %5 {strides = array<i32>} : memref<128x256xf32, #tpu.memory_space<vmem>>, vector<4x256xf32>,
      %35 = vector.extract_strided_slice %5 {offsets = [0, 1], sizes = [4, 255], strides = [1, 1]} : vector<4x256xf32> to vector<4x255xf32>
      %36 = vector.extract_strided_slice %5 {offsets = [0, 0], sizes = [4, 1], strides = [1, 1]} : vector<4x256xf32> to vector<4x1xf32>
      %37 = tpu.concatenate %35, %36 in 1 : vector<4x255xf32>, vector<4x1xf32> -> vector<4x256xf32>
      %c5 = arith.constant 5 : index
      %c0_14 = arith.constant 0 : index
      %38 = vector.load %arg3[%c5, %c0_14] : memref<9x256xf32, #tpu.memory_space<vmem>>, vector<1x256xf32>
      %39 = vector.broadcast %38 : vector<1x256xf32> to vector<4x256xf32>
      %40 = arith.mulf %37, %39 : vector<4x256xf32>
      %c20 = arith.constant 20 : index
      %c0_15 = arith.constant 0 : index
      %41 = vector.load %arg5[%c20, %c0_15] : memref<128x256xf32, #tpu.memory_space<vmem>>, vector<4x256xf32>
      tpu.vector_store %arg5[%c20, %c0_15], %40 {strides = array<i32>} : memref<128x256xf32, #tpu.memory_space<vmem>>, vector<4x256xf32>,
      %42 = vector.extract_strided_slice %5 {offsets = [0, 15], sizes = [4, 241], strides = [1, 1]} : vector<4x256xf32> to vector<4x241xf32>
      %43 = vector.extract_strided_slice %5 {offsets = [0, 0], sizes = [4, 15], strides = [1, 1]} : vector<4x256xf32> to vector<4x15xf32>
      %44 = tpu.concatenate %42, %43 in 1 : vector<4x241xf32>, vector<4x15xf32> -> vector<4x256xf32>
      %c6 = arith.constant 6 : index
      %c0_16 = arith.constant 0 : index
      %45 = vector.load %arg3[%c6, %c0_16] : memref<9x256xf32, #tpu.memory_space<vmem>>, vector<1x256xf32>
      %46 = vector.broadcast %45 : vector<1x256xf32> to vector<4x256xf32>
      %47 = arith.mulf %44, %46 : vector<4x256xf32>
      %c24 = arith.constant 24 : index
      %c0_17 = arith.constant 0 : index
      %48 = vector.load %arg5[%c24, %c0_17] : memref<128x256xf32, #tpu.memory_space<vmem>>, vector<4x256xf32>
      tpu.vector_store %arg5[%c24, %c0_17], %47 {strides = array<i32>} : memref<128x256xf32, #tpu.memory_space<vmem>>, vector<4x256xf32>,
      %49 = vector.extract_strided_slice %5 {offsets = [0, 16], sizes = [4, 240], strides = [1, 1]} : vector<4x256xf32> to vector<4x240xf32>
      %50 = vector.extract_strided_slice %5 {offsets = [0, 0], sizes = [4, 16], strides = [1, 1]} : vector<4x256xf32> to vector<4x16xf32>
      %51 = tpu.concatenate %49, %50 in 1 : vector<4x240xf32>, vector<4x16xf32> -> vector<4x256xf32>
      %c7 = arith.constant 7 : index
      %c0_18 = arith.constant 0 : index
      %52 = vector.load %arg3[%c7, %c0_18] : memref<9x256xf32, #tpu.memory_space<vmem>>, vector<1x256xf32>
      %53 = vector.broadcast %52 : vector<1x256xf32> to vector<4x256xf32>
      %54 = arith.mulf %51, %53 : vector<4x256xf32>
      %c28 = arith.constant 28 : index
      %c0_19 = arith.constant 0 : index
      %55 = vector.load %arg5[%c28, %c0_19] : memref<128x256xf32, #tpu.memory_space<vmem>>, vector<4x256xf32>
      tpu.vector_store %arg5[%c28, %c0_19], %54 {strides = array<i32>} : memref<128x256xf32, #tpu.memory_space<vmem>>, vector<4x256xf32>,
      %56 = vector.extract_strided_slice %5 {offsets = [0, 17], sizes = [4, 239], strides = [1, 1]} : vector<4x256xf32> to vector<4x239xf32>
      %57 = vector.extract_strided_slice %5 {offsets = [0, 0], sizes = [4, 17], strides = [1, 1]} : vector<4x256xf32> to vector<4x17xf32>
      %58 = tpu.concatenate %56, %57 in 1 : vector<4x239xf32>, vector<4x17xf32> -> vector<4x256xf32>
      %c8_20 = arith.constant 8 : index
      %c0_21 = arith.constant 0 : index
      %59 = vector.load %arg3[%c8_20, %c0_21] : memref<9x256xf32, #tpu.memory_space<vmem>>, vector<1x256xf32>
      %60 = vector.broadcast %59 : vector<1x256xf32> to vector<4x256xf32>
      %61 = arith.mulf %58, %60 : vector<4x256xf32>
      %c32 = arith.constant 32 : index
      %c0_22 = arith.constant 0 : index
      %62 = vector.load %arg5[%c32, %c0_22] : memref<128x256xf32, #tpu.memory_space<vmem>>, vector<4x256xf32>
      tpu.vector_store %arg5[%c32, %c0_22], %61 {strides = array<i32>} : memref<128x256xf32, #tpu.memory_space<vmem>>, vector<4x256xf32>,
      %c0_23 = arith.constant 0 : index
      %c0_24 = arith.constant 0 : index
      %63 = vector.load %arg2[%c0_23, %c0_24] : memref<8x128xf32, #tpu.memory_space<vmem>>, vector<8x128xf32>
      %c0_25 = arith.constant 0 : index
      %c0_26 = arith.constant 0 : index
      %64 = vector.load %arg5[%c0_25, %c0_26] : memref<128x256xf32, #tpu.memory_space<vmem>>, vector<128x256xf32>
      %cst_27 = arith.constant dense<0.000000e+00> : vector<8x256xf32>
      %65 = tpu.matmul %63, %64, %cst_27 {dimension_numbers = #tpu.dot_dimension_numbers<[1], [0], [0], [1], [0, 0, 1, 1], [], []>} : vector<8x128xf32>, vector<128x256xf32>, vector<8x256xf32> -> vector<8x256xf32>
      %cst_28 = arith.constant dense<0.000000e+00> : vector<8xf32>
      %66 = vector.multi_reduction <add>, %65, %cst_28 [1] : vector<8x256xf32> to vector<8xf32>
      %67 = vector.shape_cast %66 : vector<8xf32> to vector<8x1xf32>
      %cst_29 = arith.constant 3.906250e-03 : f32
      %68 = vector.broadcast %cst_29 : f32 to vector<8x1xf32>
      %69 = arith.mulf %67, %68 : vector<8x1xf32>
      %70 = vector.broadcast %69 : vector<8x1xf32> to vector<8x256xf32>
      %71 = arith.subf %65, %70 : vector<8x256xf32>
      %72 = arith.mulf %71, %71 : vector<8x256xf32>
      %cst_30 = arith.constant dense<0.000000e+00> : vector<8xf32>
      %73 = vector.multi_reduction <add>, %72, %cst_30 [1] : vector<8x256xf32> to vector<8xf32>
      %74 = vector.shape_cast %73 : vector<8xf32> to vector<8x1xf32>
      %cst_31 = arith.constant 3.906250e-03 : f32
      %75 = vector.broadcast %cst_31 : f32 to vector<8x1xf32>
      %76 = arith.mulf %74, %75 : vector<8x1xf32>
      %cst_32 = arith.constant 9.99999974E-6 : f32
      %77 = vector.broadcast %cst_32 : f32 to vector<8x1xf32>
      %78 = arith.addf %76, %77 : vector<8x1xf32>
      %79 = math.rsqrt %78 : vector<8x1xf32>
      %80 = vector.broadcast %79 : vector<8x1xf32> to vector<8x256xf32>
      %81 = arith.mulf %71, %80 : vector<8x256xf32>
      %cst_33 = arith.constant 0.000000e+00 : f32
      %82 = vector.broadcast %cst_33 : f32 to vector<8x256xf32>
      %83 = arith.cmpf ogt, %81, %82 : vector<8x256xf32>
      %cst_34 = arith.constant 0.000000e+00 : f32
      %84 = vector.broadcast %cst_34 : f32 to vector<8x256xf32>
      %85 = arith.minimumf %81, %84 : vector<8x256xf32>
      %86 = math.exp %85 : vector<8x256xf32>
      %cst_35 = arith.constant 1.000000e+00 : f32
      %87 = vector.broadcast %cst_35 : f32 to vector<8x256xf32>
      %88 = arith.subf %86, %87 : vector<8x256xf32>
      %89 = arith.select %83, %81, %88 : vector<8x256xi1>, vector<8x256xf32>
      %90 = arith.index_cast %arg6 : i32 to index
      %c0_36 = arith.constant 0 : index
      %c0_37 = arith.constant 0 : index
      %91 = vector.load %arg4[%90, %c0_36, %c0_37] : memref<2x8x256xf32, #tpu.memory_space<vmem>>, vector<1x8x256xf32>
      %92 = vector.shape_cast %91 : vector<1x8x256xf32> to vector<8x256xf32>
      %93 = vector.shape_cast %89 : vector<8x256xf32> to vector<1x8x256xf32>
      tpu.vector_store %arg4[%90, %c0_36, %c0_37], %93 {strides = array<i32>} : memref<2x8x256xf32, #tpu.memory_space<vmem>>, vector<1x8x256xf32>,
    }
    %c2_i32_0 = arith.constant 2 : i32
    return
  }
  func.func @transform_0(%arg0: i32) -> (i32, i32, i32) {
    %c0_i32 = arith.constant 0 : i32
    %c0_i32_0 = arith.constant 0 : i32
    %c0_i32_1 = arith.constant 0 : i32
    return %arg0, %c0_i32, %c0_i32_0 : i32, i32, i32
  }
  func.func @transform_1(%arg0: i32) -> (i32, i32) {
    %c0_i32 = arith.constant 0 : i32
    %c0_i32_0 = arith.constant 0 : i32
    %c0_i32_1 = arith.constant 0 : i32
    return %c0_i32, %c0_i32_0 : i32, i32
  }
  func.func @transform_2(%arg0: i32) -> (i32, i32) {
    %c0_i32 = arith.constant 0 : i32
    %c0_i32_0 = arith.constant 0 : i32
    %c0_i32_1 = arith.constant 0 : i32
    return %c0_i32, %c0_i32_0 : i32, i32
  }
  func.func @transform_3(%arg0: i32) -> (i32, i32, i32) {
    %c0_i32 = arith.constant 0 : i32
    %c0_i32_0 = arith.constant 0 : i32
    %c0_i32_1 = arith.constant 0 : i32
    return %arg0, %c0_i32, %c0_i32_0 : i32, i32, i32
  }
}

</mosaic_0001>

<llo_original>
// kernel: tpu_custom_call.1
$region0: #{tpu_custom_call.1}
  #allocation0 [shape = 'u32[]', space=smem, size = 0x4, offset = 0x4, fixed_abs, tag = 'smem constant byte address 0x4 - core index']
  #allocation1 [shape = 'u32[72,128]{1,0:T(1,128)}', space=vmem, size = 0x9000, scoped, tag = 'internal scratch']
  #allocation2 [shape = 'f32[128,256]{1,0:T(8,128)}', space=vmem, size = 0x20000, scoped, tag = 'scratch operand']
  %s0 = inlined_call_operand.hbm [shape: f32[2,4,256], index: 0, kind: input, shape index: {}]
  %s1 = inlined_call_operand.hbm [shape: f32[8,128], index: 1, kind: input, shape index: {}]
  %s2 = inlined_call_operand.hbm [shape: f32[9,256], index: 2, kind: input, shape index: {}]
  %s3 = inlined_call_operand.hbm [shape: f32[2,8,256], index: 3, kind: output, shape index: {}]
  %s4 = sld [smem:[#allocation0]]
  $region41: #{tpu_custom_call.1} parent=0
    _
  %s6 = ssub.s32 1, %s4
  %s7 = scalar_select 0, %s6, %s4
  $region1: #{tpu_custom_call.1} parent=0
    #allocation3 [shape = 'u8[8192]{0}', space=vmem, size = 0x2000, scoped, tag = 'input window, operand 0, single buffered']
    #allocation4 [shape = 's32[1]{0}', space=sflag, size = 0x4, scoped, tag = 'scoped memory for tpu_custom_call.1']
    #allocation5 [shape = 's32[1]{0}', space=sflag, size = 0x4, scoped, tag = 'scoped memory for tpu_custom_call.1']
    #allocation6 [shape = 'u8[4096]{0}', space=vmem, size = 0x1000, scoped, tag = 'input window, operand 1, single buffered']
    #allocation7 [shape = 's32[1]{0}', space=sflag, size = 0x4, scoped, tag = 'scoped memory for tpu_custom_call.1']
    #allocation8 [shape = 'u8[16384]{0}', space=vmem, size = 0x4000, scoped, tag = 'input window, operand 2, single buffered']
    #allocation9 [shape = 'u8[16384]{0}', space=vmem, size = 0x4000, scoped, tag = 'output window, operand 0, single buffered']
    %8 = vsyncpa [#allocation4], 0
    %9 = vsyncpa [#allocation7], 0
    %10 = vsyncpa [#allocation5], 0
    // Predicated region
    $region2: #{tpu_custom_call.1} parent=1 // pred_check
      _
    $region3: #{tpu_custom_call.1} parent=1 // pred_check_branch
      %12 = sbr.rel (0) target = $region5
    $region4: #{tpu_custom_call.1} parent=1 // pred_region
      %14 = vsyncadd [#allocation4], 0
      %s15 = sshll.u32 %s0, 4
      %s16 = int_to_ptr.hbm [resolvable:$true] %s15
      %s17 = sshll.u32 [#allocation3], 4
      %s18 = int_to_ptr.vmem [resolvable:$true] %s17
      %23 = dma.hbm_to_vmem [thread:$0]  %s16, 256, %s18, [#allocation4], 128, 128, 8
    $region5: #{tpu_custom_call.1} parent=1 // pred_fallthru
      _
    // Predicated region
    $region6: #{tpu_custom_call.1} parent=1 // pred_check
      _
    $region7: #{tpu_custom_call.1} parent=1 // pred_check_branch
      %25 = sbr.rel (0) target = $region9
    $region8: #{tpu_custom_call.1} parent=1 // pred_region
      %27 = vsyncadd [#allocation7], 0
      %s29 = sshll.u32 %s1, 4
      %s30 = int_to_ptr.hbm [resolvable:$true] %s29
      %s31 = sshll.u32 [#allocation6], 4
      %s32 = int_to_ptr.vmem [resolvable:$true] %s31
      %34 = dma.hbm_to_vmem [thread:$0]  %s30, 128, %s32, [#allocation7]
    $region9: #{tpu_custom_call.1} parent=1 // pred_fallthru
      _
    // Predicated region
    $region10: #{tpu_custom_call.1} parent=1 // pred_check
      _
    $region11: #{tpu_custom_call.1} parent=1 // pred_check_branch
      %36 = sbr.rel (0) target = $region13
    $region12: #{tpu_custom_call.1} parent=1 // pred_region
      %38 = vsyncadd [#allocation7], 0
      %s39 = sshll.u32 %s2, 4
      %s40 = int_to_ptr.hbm [resolvable:$true] %s39
      %s41 = sshll.u32 [#allocation8], 4
      %s42 = int_to_ptr.vmem [resolvable:$true] %s41
      %47 = dma.hbm_to_vmem [thread:$0]  %s40, 512, %s42, [#allocation7], 256, 256, 16
    $region13: #{tpu_custom_call.1} parent=1 // pred_fallthru
      _
    // Predicated region
    $region14: #{tpu_custom_call.1} parent=1 // pred_check
      _
    $region15: #{tpu_custom_call.1} parent=1 // pred_check_branch
      %49 = sbr.rel (0) target = $region17
    $region16: #{tpu_custom_call.1} parent=1 // pred_region
      %51 = dma.done [#allocation4], 256
    $region17: #{tpu_custom_call.1} parent=1 // pred_fallthru
      _
    // Predicated region
    $region18: #{tpu_custom_call.1} parent=1 // pred_check
      _
    $region19: #{tpu_custom_call.1} parent=1 // pred_check_branch
      %53 = sbr.rel (0) target = $region21
    $region20: #{tpu_custom_call.1} parent=1 // pred_region
      %55 = dma.done [#allocation7], 128
    $region21: #{tpu_custom_call.1} parent=1 // pred_fallthru
      _
    // Predicated region
    $region22: #{tpu_custom_call.1} parent=1 // pred_check
      _
    $region23: #{tpu_custom_call.1} parent=1 // pred_check_branch
      %57 = sbr.rel (0) target = $region25
    $region24: #{tpu_custom_call.1} parent=1 // pred_region
      %59 = dma.done [#allocation7], 512
    $region25: #{tpu_custom_call.1} parent=1 // pred_fallthru
      _
    %60 = vst [vmem:[#allocation2 + $0x40] sm:$0xf0] 0.0
    %61 = vst [vmem:[#allocation2 + $0x48] sm:$0xf0] 0.0
    %62 = vst [vmem:[#allocation2 + $0x50] sm:$0xff] 0.0
    %63 = vst [vmem:[#allocation2 + $0x58] sm:$0xff] 0.0
    %64 = vst [vmem:[#allocation2 + $0x60] sm:$0xff] 0.0
    %65 = vst [vmem:[#allocation2 + $0x68] sm:$0xff] 0.0
    %66 = vst [vmem:[#allocation2 + $0x70] sm:$0xff] 0.0
    %67 = vst [vmem:[#allocation2 + $0x78] sm:$0xff] 0.0
    %68 = vst [vmem:[#allocation2 + $0x80] sm:$0xff] 0.0
    %69 = vst [vmem:[#allocation2 + $0x88] sm:$0xff] 0.0
    %70 = vst [vmem:[#allocation2 + $0x90] sm:$0xff] 0.0
    %71 = vst [vmem:[#allocation2 + $0x98] sm:$0xff] 0.0
    %72 = vst [vmem:[#allocation2 + $0xa0] sm:$0xff] 0.0
    %73 = vst [vmem:[#allocation2 + $0xa8] sm:$0xff] 0.0
    %74 = vst [vmem:[#allocation2 + $0xb0] sm:$0xff] 0.0
    %75 = vst [vmem:[#allocation2 + $0xb8] sm:$0xff] 0.0
    %76 = vst [vmem:[#allocation2 + $0xc0] sm:$0xff] 0.0
    %77 = vst [vmem:[#allocation2 + $0xc8] sm:$0xff] 0.0
    %78 = vst [vmem:[#allocation2 + $0xd0] sm:$0xff] 0.0
    %79 = vst [vmem:[#allocation2 + $0xd8] sm:$0xff] 0.0
    %80 = vst [vmem:[#allocation2 + $0xe0] sm:$0xff] 0.0
    %81 = vst [vmem:[#allocation2 + $0xe8] sm:$0xff] 0.0
    %82 = vst [vmem:[#allocation2 + $0xf0] sm:$0xff] 0.0
    %83 = vst [vmem:[#allocation2 + $0xf8] sm:$0xff] 0.0
    loop: start=0, step=1, limit=2
    $region26: #{tpu_custom_call.1} parent=1 // loop_pre_header
      _
    $region27: #{tpu_custom_call.1} parent=1 // loop_header
      %s85 = sphi 0, %s89
      %p86 = scmp.ge.s32.totalorder %s85, 2
    $region28: #{tpu_custom_call.1} parent=1 // loop_header_branch
      %88 = sbr.rel (%p86) target = $region32
    $region29: #{tpu_custom_call.1} parent=1 // loop_body
      %s90 = smul.u32 %s85, 2
      %s91 = smul.addr %s90, 4
      %s92 = scalar_lea.vmem [#allocation3], %s91
      %v93 = vld [vmem:[%s92] sm:$0xff]
      %95 = vst [vmem:[#allocation1] ss:$2 sm:$0xff] %v93
      %v96 = vld.sshfl [vmem:[#allocation1 + $0x8] sm:$0xff pattern:$0x75316420]
      %97 = vrot.lane.b32.xlu0 %v96, 17
      %v98 = vpop.permute.xlu0 %97
      %100 = vst [vmem:[#allocation1] ss:$2 sm:$0xff] %v93
      %v101 = vld.sshfl [vmem:[#allocation1] sm:$0xff pattern:$0x75316420]
      %v102 = vld.sshfl [vmem:[#allocation1 + $0x8] sm:$0xff pattern:$0x75316420]
      %103 = vrot.lane.b32.xlu0 %v101, 17
      %v104 = vpop.permute.xlu0 %103
      %105 = vrot.lane.b32.xlu0 %v102, 17
      %v106 = vpop.permute.xlu0 %105
      %vm107 = vcmask 138240
      %v108 = vsel %vm107, %v104, %v106
      %v111 = vsel %vm107, %v98, %v104
      %v112 = vld [vmem:[#allocation8] ss:$8 sm:$0x3]
      %v114 = vperm.slane %v112, 0
      %v115 = vperm.slane %v112, 1
      %v118 = vmul.f32 %v111, %v114
      %v119 = vmul.f32 %v108, %v115
      %120 = vst [vmem:[#allocation2] sm:$0xf] %v118
      %121 = vst [vmem:[#allocation2 + $0x8] sm:$0xf] %v119
      %122 = vst [vmem:[#allocation1] ss:$2 sm:$0xff] %v93
      %v123 = vld.sshfl [vmem:[#allocation1 + $0x8] sm:$0xff pattern:$0x75316420]
      %124 = vrot.lane.b32.xlu0 %v123, 16
      %v125 = vpop.permute.xlu0 %124
      %127 = vst [vmem:[#allocation1] ss:$2 sm:$0xff] %v93
      %v128 = vld.sshfl [vmem:[#allocation1] sm:$0xff pattern:$0x75316420]
      %v129 = vld.sshfl [vmem:[#allocation1 + $0x8] sm:$0xff pattern:$0x75316420]
      %130 = vrot.lane.b32.xlu0 %v128, 16
      %v131 = vpop.permute.xlu0 %130
      %132 = vrot.lane.b32.xlu0 %v129, 16
      %v133 = vpop.permute.xlu0 %132
      %vm134 = vcmask 130048
      %v135 = vsel %vm134, %v131, %v133
      %v138 = vsel %vm134, %v125, %v131
      %s139 = scalar_lea.vmem [#allocation8], 1
      %v140 = vld [vmem:[%s139] ss:$8 sm:$0x3]
      %v142 = vperm.slane %v140, 0
      %v143 = vperm.slane %v140, 1
      %v146 = vmul.f32 %v138, %v142
      %v147 = vmul.f32 %v135, %v143
      %v150 = vrot.slane %v146, 4
      %v151 = vrot.slane %v147, 4
      %154 = vst [vmem:[#allocation2] sm:$0xf0] %v150
      %155 = vst [vmem:[#allocation2 + $0x8] sm:$0xf0] %v151
      %156 = vst [vmem:[#allocation1] ss:$2 sm:$0xff] %v93
      %v157 = vld.sshfl [vmem:[#allocation1 + $0x8] sm:$0xff pattern:$0x75316420]
      %158 = vrot.lane.b32.xlu0 %v157, 15
      %v159 = vpop.permute.xlu0 %158
      %161 = vst [vmem:[#allocation1] ss:$2 sm:$0xff] %v93
      %v162 = vld.sshfl [vmem:[#allocation1] sm:$0xff pattern:$0x75316420]
      %v163 = vld.sshfl [vmem:[#allocation1 + $0x8] sm:$0xff pattern:$0x75316420]
      %164 = vrot.lane.b32.xlu0 %v162, 15
      %v165 = vpop.permute.xlu0 %164
      %166 = vrot.lane.b32.xlu0 %v163, 15
      %v167 = vpop.permute.xlu0 %166
      %vm168 = vcmask 121856
      %v169 = vsel %vm168, %v165, %v167
      %v172 = vsel %vm168, %v159, %v165
      %s173 = scalar_lea.vmem [#allocation8], 2
      %v174 = vld [vmem:[%s173] ss:$8 sm:$0x3]
      %v176 = vperm.slane %v174, 0
      %v177 = vperm.slane %v174, 1
      %v180 = vmul.f32 %v172, %v176
      %v181 = vmul.f32 %v169, %v177
      %182 = vst [vmem:[#allocation2 + $0x10] sm:$0xf] %v180
      %183 = vst [vmem:[#allocation2 + $0x18] sm:$0xf] %v181
      %184 = vst [vmem:[#allocation1] ss:$2 sm:$0xff] %v93
      %v185 = vld.sshfl [vmem:[#allocation1 + $0x8] sm:$0xff pattern:$0x75316420]
      %186 = vrot.lane.b32.xlu0 %v185, 1
      %v187 = vpop.permute.xlu0 %186
      %189 = vst [vmem:[#allocation1] ss:$2 sm:$0xff] %v93
      %v190 = vld.sshfl [vmem:[#allocation1] sm:$0xff pattern:$0x75316420]
      %v191 = vld.sshfl [vmem:[#allocation1 + $0x8] sm:$0xff pattern:$0x75316420]
      %192 = vrot.lane.b32.xlu0 %v190, 1
      %v193 = vpop.permute.xlu0 %192
      %194 = vrot.lane.b32.xlu0 %v191, 1
      %v195 = vpop.permute.xlu0 %194
      %vm196 = vcmask 7168
      %v197 = vsel %vm196, %v193, %v195
      %v200 = vsel %vm196, %v187, %v193
      %s201 = scalar_lea.vmem [#allocation8], 3
      %v202 = vld [vmem:[%s201] ss:$8 sm:$0x3]
      %v204 = vperm.slane %v202, 0
      %v205 = vperm.slane %v202, 1
      %v208 = vmul.f32 %v200, %v204
      %v209 = vmul.f32 %v197, %v205
      %v212 = vrot.slane %v208, 4
      %v213 = vrot.slane %v209, 4
      %216 = vst [vmem:[#allocation2 + $0x10] sm:$0xf0] %v212
      %217 = vst [vmem:[#allocation2 + $0x18] sm:$0xf0] %v213
      %218 = vst [vmem:[#allocation1] ss:$2 sm:$0xff] %v93
      %v219 = vld.sshfl [vmem:[#allocation1] sm:$0xff pattern:$0x75316420]
      %v220 = vld.sshfl [vmem:[#allocation1 + $0x8] sm:$0xff pattern:$0x75316420]
      %223 = vst [vmem:[#allocation2 + $0x20] sm:$0xf] %v219
      %224 = vst [vmem:[#allocation2 + $0x28] sm:$0xf] %v220
      %225 = vst [vmem:[#allocation1] ss:$2 sm:$0xff] %v93
      %v226 = vld.sshfl [vmem:[#allocation1] sm:$0xff pattern:$0x75316420]
      %v227 = vld.sshfl [vmem:[#allocation1 + $0x8] sm:$0xff pattern:$0x75316420]
      %228 = vrot.lane.b32.xlu0 %v226, 127
      %v229 = vpop.permute.xlu0 %228
      %230 = vrot.lane.b32.xlu0 %v227, 127
      %v231 = vpop.permute.xlu0 %230
      %vm232 = vcmask 1039360
      %v233 = vsel %vm232, %v229, %v231
      %236 = vst [vmem:[#allocation1] ss:$2 sm:$0xff] %v93
      %v237 = vld.sshfl [vmem:[#allocation1] sm:$0xff pattern:$0x75316420]
      %238 = vrot.lane.b32.xlu0 %v237, 127
      %v239 = vpop.permute.xlu0 %238
      %v241 = vsel %vm232, %v231, %v239
      %s242 = scalar_lea.vmem [#allocation8], 5
      %v243 = vld [vmem:[%s242] ss:$8 sm:$0x3]
      %v245 = vperm.slane %v243, 0
      %v246 = vperm.slane %v243, 1
      %v249 = vmul.f32 %v233, %v245
      %v250 = vmul.f32 %v241, %v246
      %v253 = vrot.slane %v249, 4
      %v254 = vrot.slane %v250, 4
      %257 = vst [vmem:[#allocation2 + $0x20] sm:$0xf0] %v253
      %258 = vst [vmem:[#allocation2 + $0x28] sm:$0xf0] %v254
      %259 = vst [vmem:[#allocation1] ss:$2 sm:$0xff] %v93
      %v260 = vld.sshfl [vmem:[#allocation1] sm:$0xff pattern:$0x75316420]
      %v261 = vld.sshfl [vmem:[#allocation1 + $0x8] sm:$0xff pattern:$0x75316420]
      %262 = vrot.lane.b32.xlu0 %v260, 113
      %v263 = vpop.permute.xlu0 %262
      %264 = vrot.lane.b32.xlu0 %v261, 113
      %v265 = vpop.permute.xlu0 %264
      %vm266 = vcmask 924672
      %v267 = vsel %vm266, %v263, %v265
      %270 = vst [vmem:[#allocation1] ss:$2 sm:$0xff] %v93
      %v271 = vld.sshfl [vmem:[#allocation1] sm:$0xff pattern:$0x75316420]
      %272 = vrot.lane.b32.xlu0 %v271, 113
      %v273 = vpop.permute.xlu0 %272
      %v275 = vsel %vm266, %v265, %v273
      %s276 = scalar_lea.vmem [#allocation8], 6
      %v277 = vld [vmem:[%s276] ss:$8 sm:$0x3]
      %v279 = vperm.slane %v277, 0
      %v280 = vperm.slane %v277, 1
      %v283 = vmul.f32 %v267, %v279
      %v284 = vmul.f32 %v275, %v280
      %285 = vst [vmem:[#allocation2 + $0x30] sm:$0xf] %v283
      %286 = vst [vmem:[#allocation2 + $0x38] sm:$0xf] %v284
      %287 = vst [vmem:[#allocation1] ss:$2 sm:$0xff] %v93
      %v288 = vld.sshfl [vmem:[#allocation1] sm:$0xff pattern:$0x75316420]
      %v289 = vld.sshfl [vmem:[#allocation1 + $0x8] sm:$0xff pattern:$0x75316420]
      %290 = vrot.lane.b32.xlu0 %v288, 112
      %v291 = vpop.permute.xlu0 %290
      %292 = vrot.lane.b32.xlu0 %v289, 112
      %v293 = vpop.permute.xlu0 %292
      %vm294 = vcmask 916480
      %v295 = vsel %vm294, %v291, %v293
      %298 = vst [vmem:[#allocation1] ss:$2 sm:$0xff] %v93
      %v299 = vld.sshfl [vmem:[#allocation1] sm:$0xff pattern:$0x75316420]
      %300 = vrot.lane.b32.xlu0 %v299, 112
      %v301 = vpop.permute.xlu0 %300
      %v303 = vsel %vm294, %v293, %v301
      %s304 = scalar_lea.vmem [#allocation8], 7
      %v305 = vld [vmem:[%s304] ss:$8 sm:$0x3]
      %v307 = vperm.slane %v305, 0
      %v308 = vperm.slane %v305, 1
      %v311 = vmul.f32 %v295, %v307
      %v312 = vmul.f32 %v303, %v308
      %v315 = vrot.slane %v311, 4
      %v316 = vrot.slane %v312, 4
      %319 = vst [vmem:[#allocation2 + $0x30] sm:$0xf0] %v315
      %320 = vst [vmem:[#allocation2 + $0x38] sm:$0xf0] %v316
      %321 = vst [vmem:[#allocation1] ss:$2 sm:$0xff] %v93
      %v322 = vld.sshfl [vmem:[#allocation1] sm:$0xff pattern:$0x75316420]
      %v323 = vld.sshfl [vmem:[#allocation1 + $0x8] sm:$0xff pattern:$0x75316420]
      %324 = vrot.lane.b32.xlu0 %v322, 111
      %v325 = vpop.permute.xlu0 %324
      %326 = vrot.lane.b32.xlu0 %v323, 111
      %v327 = vpop.permute.xlu0 %326
      %vm328 = vcmask 908288
      %v329 = vsel %vm328, %v325, %v327
      %332 = vst [vmem:[#allocation1] ss:$2 sm:$0xff] %v93
      %v333 = vld.sshfl [vmem:[#allocation1] sm:$0xff pattern:$0x75316420]
      %334 = vrot.lane.b32.xlu0 %v333, 111
      %v335 = vpop.permute.xlu0 %334
      %v337 = vsel %vm328, %v327, %v335
      %s338 = scalar_lea.vmem [#allocation8], 16
      %v339 = vld [vmem:[%s338] ss:$8 sm:$0x3]
      %v341 = vperm.slane %v339, 0
      %v342 = vperm.slane %v339, 1
      %v345 = vmul.f32 %v329, %v341
      %v346 = vmul.f32 %v337, %v342
      %347 = vst [vmem:[#allocation2 + $0x40] sm:$0xf] %v345
      %348 = vst [vmem:[#allocation2 + $0x48] sm:$0xf] %v346
      %v349 = vld [vmem:[#allocation6] sm:$0xff]
      %v350 = vld [vmem:[#allocation2] sm:$0xff]
      %v351 = vld [vmem:[#allocation2 + $0x8] sm:$0xff]
      %v352 = vld [vmem:[#allocation2 + $0x10] sm:$0xff]
      %v353 = vld [vmem:[#allocation2 + $0x18] sm:$0xff]
      %v354 = vld [vmem:[#allocation2 + $0x20] sm:$0xff]
      %v355 = vld [vmem:[#allocation2 + $0x28] sm:$0xff]
      %v356 = vld [vmem:[#allocation2 + $0x30] sm:$0xff]
      %v357 = vld [vmem:[#allocation2 + $0x38] sm:$0xff]
      %v358 = vld [vmem:[#allocation2 + $0x40] sm:$0xff]
      %v359 = vld [vmem:[#allocation2 + $0x48] sm:$0xff]
      %v360 = vld [vmem:[#allocation2 + $0x50] sm:$0xff]
      %v361 = vld [vmem:[#allocation2 + $0x58] sm:$0xff]
      %v362 = vld [vmem:[#allocation2 + $0x60] sm:$0xff]
      %v363 = vld [vmem:[#allocation2 + $0x68] sm:$0xff]
      %v364 = vld [vmem:[#allocation2 + $0x70] sm:$0xff]
      %v365 = vld [vmem:[#allocation2 + $0x78] sm:$0xff]
      %v366 = vld [vmem:[#allocation2 + $0x80] sm:$0xff]
      %v367 = vld [vmem:[#allocation2 + $0x88] sm:$0xff]
      %v368 = vld [vmem:[#allocation2 + $0x90] sm:$0xff]
      %v369 = vld [vmem:[#allocation2 + $0x98] sm:$0xff]
      %v370 = vld [vmem:[#allocation2 + $0xa0] sm:$0xff]
      %v371 = vld [vmem:[#allocation2 + $0xa8] sm:$0xff]
      %v372 = vld [vmem:[#allocation2 + $0xb0] sm:$0xff]
      %v373 = vld [vmem:[#allocation2 + $0xb8] sm:$0xff]
      %v374 = vld [vmem:[#allocation2 + $0xc0] sm:$0xff]
      %v375 = vld [vmem:[#allocation2 + $0xc8] sm:$0xff]
      %v376 = vld [vmem:[#allocation2 + $0xd0] sm:$0xff]
      %v377 = vld [vmem:[#allocation2 + $0xd8] sm:$0xff]
      %v378 = vld [vmem:[#allocation2 + $0xe0] sm:$0xff]
      %v379 = vld [vmem:[#allocation2 + $0xe8] sm:$0xff]
      %v380 = vld [vmem:[#allocation2 + $0xf0] sm:$0xff]
      %v381 = vld [vmem:[#allocation2 + $0xf8] sm:$0xff]
      %382 = vmatpush.msra.mxu0 %v380
      %383 = vmatpush.msra.mxu0 %v378
      %384 = vmatpush.msra.mxu0 %v376
      %385 = vmatpush.msra.mxu0 %v374
      %386 = vmatpush.msra.mxu0 %v372
      %387 = vmatpush.msra.mxu0 %v370
      %388 = vmatpush.msra.mxu0 %v368
      %389 = vmatpush.msra.mxu0 %v366
      %390 = vmatpush.msra.mxu0 %v364
      %391 = vmatpush.msra.mxu0 %v362
      %392 = vmatpush.msra.mxu0 %v360
      %393 = vmatpush.msra.mxu0 %v358
      %394 = vmatpush.msra.mxu0 %v356
      %395 = vmatpush.msra.mxu0 %v354
      %396 = vmatpush.msra.mxu0 %v352
      %397 = vmatpush.msra.mxu0 %v350
      %398 = vmatmul.f32.gmra.mxu0 %v349
      %v399 = vpop.f32.mrf.mxu0
      %v400 = vadd.f32 0.0, %v399
      %401 = vdwg.mxu0
      %402 = vmatpush.msra.mxu0 %v381
      %403 = vmatpush.msra.mxu0 %v379
      %404 = vmatpush.msra.mxu0 %v377
      %405 = vmatpush.msra.mxu0 %v375
      %406 = vmatpush.msra.mxu0 %v373
      %407 = vmatpush.msra.mxu0 %v371
      %408 = vmatpush.msra.mxu0 %v369
      %409 = vmatpush.msra.mxu0 %v367
      %410 = vmatpush.msra.mxu0 %v365
      %411 = vmatpush.msra.mxu0 %v363
      %412 = vmatpush.msra.mxu0 %v361
      %413 = vmatpush.msra.mxu0 %v359
      %414 = vmatpush.msra.mxu0 %v357
      %415 = vmatpush.msra.mxu0 %v355
      %416 = vmatpush.msra.mxu0 %v353
      %417 = vmatpush.msra.mxu0 %v351
      %418 = vmatmul.f32.gmra.mxu0 %v349
      %v419 = vpop.f32.mrf.mxu0
      %v420 = vadd.f32 0.0, %v419
      %421 = vdwg.mxu0
      %v422 = vadd.f32 %v400, %v420
      %423 = vadd.xlane.f32.xlu0 %v422
      %v424 = vpop.xlane.xlu0 %423
      %v425 = vmul.f32 %v424, 0.00390625
      %v426 = vsub.f32 %v400, %v425
      %v427 = vsub.f32 %v420, %v425
      %v428 = vmul.f32 %v426, %v426
      %v429 = vmul.f32 %v427, %v427
      %v430 = vadd.f32 %v428, %v429
      %431 = vadd.xlane.f32.xlu0 %v430
      %v432 = vpop.xlane.xlu0 %431
      %v433 = vmul.f32 %v432, 0.00390625
      %v434 = vadd.f32 %v433, 1e-05
      %v435 = vrsqrt.pop %v434
      %v436 = vmul.f32 %v435, %v434
      %v437 = vmul.f32 %v436, %v435
      %v438 = vmul.f32 0.5, %v437
      %v439 = vsub.f32 1.5, %v438
      %v440 = vmul.f32 %v435, %v439
      %vm441 = vweird.f32 %v434
      %vm442 = vweird.f32 %v435
      %vm443 = vmor %vm441, %vm442
      %v444 = vsel %vm443, %v435, %v440
      %v445 = vmul.f32 %v426, %v444
      %v446 = vmul.f32 %v427, %v444
      %vm447 = vcmp.gt.f32.partialorder %v445, 0.0
      %vm448 = vcmp.gt.f32.partialorder %v446, 0.0
      %v449 = vmin.f32 %v445, 0.0
      %v450 = vmin.f32 %v446, 0.0
      %v451 = vmul.f32 %v449, 1.442695
      %v452 = vpow.pop %v451
      %v453 = vmul.f32 %v450, 1.442695
      %v454 = vpow.pop %v453
      %v455 = vsub.f32 %v452, 1.0
      %v456 = vsub.f32 %v454, 1.0
      %v457 = vsel %vm447, %v445, %v455
      %v458 = vsel %vm448, %v446, %v456
      %s459 = smul.addr %s90, 8
      %s460 = scalar_lea.vmem [#allocation9], %s459
      %461 = vst [vmem:[%s460] sm:$0xff] %v457
      %462 = vst [vmem:[%s460 + $0x8] sm:$0xff] %v458
    $region30: #{tpu_custom_call.1} parent=1 // loop_footer
      %s89 = sadd.s32 1, %s85
    $region31: #{tpu_custom_call.1} parent=1 // loop_footer_branch
      %84 = sbr.rel target = $region27
    $region32: #{tpu_custom_call.1} parent=1 // loop_exit
      _
    // Predicated region
    $region33: #{tpu_custom_call.1} parent=1 // pred_check
      _
    $region34: #{tpu_custom_call.1} parent=1 // pred_check_branch
      %464 = sbr.rel (0) target = $region36
    $region35: #{tpu_custom_call.1} parent=1 // pred_region
      %466 = vsyncadd [#allocation5], 0
      %s467 = sshll.u32 [#allocation9], 4
      %s468 = int_to_ptr.vmem [resolvable:$true] %s467
      %s469 = sshll.u32 %s3, 4
      %s470 = int_to_ptr.hbm [resolvable:$true] %s469
      %475 = dma.vmem_to_hbm [thread:$0]  %s468, 512, %s470, [#allocation5], 256, 256, 16
    $region36: #{tpu_custom_call.1} parent=1 // pred_fallthru
      _
    // Predicated region
    $region37: #{tpu_custom_call.1} parent=1 // pred_check
      _
    $region38: #{tpu_custom_call.1} parent=1 // pred_check_branch
      %477 = sbr.rel (0) target = $region40
    $region39: #{tpu_custom_call.1} parent=1 // pred_region
      %479 = dma.done [#allocation5], 512
    $region40: #{tpu_custom_call.1} parent=1 // pred_fallthru
      _
    %480 = vsyncpa [#allocation4], 1
    %481 = vsyncpa [#allocation7], 1
    %482 = vsyncpa [#allocation5], 1

</llo_original>
